<compile_context>
chip_gen: v7x
topology: tpu7x:2x2x1
jax: 0.10.0
libtpu: 0.0.40
codegen_flags: <defaults>
</compile_context>

<pallas_src>
import functools

import jax
import jax.numpy as jnp
from jax.experimental import pallas as pl
from jax.experimental.pallas import tpu as pltpu

_VMEM_BUDGET = 40 * 2**20      # working-set budget (safe on v7x's 64 MiB/TC)
_VMEM_LIMIT_CAP = 56 * 2**20   # never request more than this from Mosaic


def _round_up(n, m):
    return (n + m - 1) // m * m


def _per_tile_bytes(block_m, D, O_lane, x_itemsize, out_itemsize):
    """VMEM working set of one token tile, INCLUDING in-kernel temporaries."""
    D_lane = _round_up(D, 128)
    return (2 * block_m * D_lane * x_itemsize      # x tile, double-buffered
            + 2 * block_m * O_lane * out_itemsize  # out tile, double-buffered
            + 5 * block_m * D_lane * 4             # f32 element-math temporaries
            + block_m * O_lane * 4)                # f32 matmul accumulator


def _auto_block_m(M, D, O_lane, x_itemsize, out_itemsize, fixed_bytes):
    """Largest token tile (multiple of 32, capped at 512) whose full working
    set (I/O blocks + in-kernel temps) fits the VMEM budget."""
    cap = _round_up(M, 32)
    chosen = 32
    # 512 already reaches ~85% of the HBM roofline; 1024 would double the
    # temp footprint and hurt 2-TC load balance on v7x.
    for cand in (512, 256, 128, 64, 32):
        if cand > cap:
            continue
        per = _per_tile_bytes(cand, D, O_lane, x_itemsize, out_itemsize)
        if fixed_bytes + per <= _VMEM_BUDGET:
            chosen = cand
            break
    # Keep >= 4 grid steps when the problem is big enough so both v7x
    # TensorCores get balanced work from the "parallel" token axis.
    while chosen > 256 and -(-M // chosen) < 4:
        chosen //= 2
    return chosen


def _patch_proj_kernel(x_ref, g_ref, b_ref, w_ref, o_ref):
    """Fused LayerNorm + SiLU + Linear (no bias) on one token tile.

    x_ref: (Tm, D)      token tile (streamed)
    g_ref: (1,  D)      LayerNorm gamma, in the element-compute dtype
    b_ref: (1,  D)      LayerNorm beta,  in the element-compute dtype
    w_ref: (D,  O_out)  projection weight (in, out), stored dtype fed to MXU
    o_ref: (Tm, O_out)  output tile

    Per-row LayerNorm statistics are always f32 ((Tm,1) tensors); the
    per-element apply chain + SiLU + matmul LHS run in g_ref.dtype (bf16 on the
    bf16-activation path -> bf16 VALU on v6e/v7x, no whole-tile f32 temps).
    """
    cdt = g_ref.dtype

    x32 = x_ref[...].astype(jnp.float32)
    inv_d = 1.0 / x32.shape[-1]
    # One-pass stats (biased variance, eps=1e-5: PyTorch LayerNorm semantics).
    s1 = jnp.sum(x32, axis=-1, keepdims=True)
    s2 = jnp.sum(x32 * x32, axis=-1, keepdims=True)
    mean = s1 * inv_d
    var = jnp.maximum(s2 * inv_d - mean * mean, 0.0)
    inv = jax.lax.rsqrt(var + 1e-5)

    # LayerNorm apply + SiLU in the compute dtype.
    xc = x_ref[...].astype(cdt)
    xn = (xc - mean.astype(cdt)) * inv.astype(cdt) * g_ref[...] + b_ref[...]
    h = xn * jax.nn.sigmoid(xn)

    # Linear, no bias. MXU in the weight's stored dtype, f32 accumulation.
    y = jnp.dot(h.astype(w_ref.dtype), w_ref[...],
                preferred_element_type=jnp.float32)
    o_ref[...] = y.astype(o_ref.dtype)


def patch_proj_out(x, gamma, beta, w_t, *, sample_size, patch_size, channels,
                   block_m=None, compute_dtype=None, weight_dtype=None):
    """Pallas implementation of PatchProjOut.forward.

    x      : [B, N, D]  with N = (sample_size // patch_size) ** 2
    gamma  : [D]        LayerNorm weight
    beta   : [D]        LayerNorm bias
    w_t    : [D, O]     Linear weight transposed, O = channels * patch_size**2,
                        columns in the module's native (ph, pw, c) order
    returns: [B, C, sample_size, sample_size]  (NCHW, like PyTorch)

    Recommended fast path: bf16 activations. With bf16 `x`, the LN/SiLU element
    math runs in bf16 and an f32 `w_t` is auto-cast to bf16 (native MXU path);
    f32 `x` keeps everything, weight included, in f32.
    """
    B, N, D = x.shape
    O = channels * patch_size * patch_size
    n_patches = sample_size // patch_size
    assert N == n_patches * n_patches, "seq length must equal n_patches**2"
    assert w_t.shape == (D, O), "w_t must be the Linear weight transposed to (D, O)"

    # --- dtype policy --------------------------------------------------------
    x_is_bf16 = x.dtype == jnp.bfloat16
    if compute_dtype is None:
        compute_dtype = jnp.bfloat16 if x_is_bf16 else jnp.float32
    if weight_dtype is None:
        weight_dtype = jnp.bfloat16 if x_is_bf16 else w_t.dtype
    w_t = w_t.astype(weight_dtype)

    # --- weight-column permutation to channel-major (c, ph, pw) --------------
    # Makes the post-kernel NCHW rearrange copy contiguous innermost runs.
    if patch_size > 1:
        w_t = jnp.transpose(
            w_t.reshape(D, patch_size, patch_size, channels),
            (0, 3, 1, 2)).reshape(D, O)

    # --- lane-dense output padding -------------------------------------------
    # Zero-pad O to a multiple of 128 (zero weight columns -> zero outputs) so
    # writeback uses unmasked dense stores; skip for tiny O where the extra
    # padded bytes would outweigh the masked-store penalty.
    pad_o = (O % 128 != 0) and (O >= 64)
    O_out = _round_up(O, 128) if pad_o else O
    if pad_o:
        w_t = jnp.pad(w_t, ((0, 0), (0, O_out - O)))

    # --- tiling ---------------------------------------------------------------
    M = B * N
    x_itemsize = jnp.dtype(x.dtype).itemsize
    w_itemsize = jnp.dtype(w_t.dtype).itemsize
    out_itemsize = x_itemsize
    O_lane = _round_up(O_out, 128)
    D_lane = _round_up(D, 128)

    # Resident bytes independent of the token tile: weight (2 pipeline copies;
    # constant index_map so it is only fetched once) + gamma/beta copies.
    fixed_bytes = (2 * _round_up(D, 8) * O_lane * w_itemsize
                   + 2 * 2 * 8 * D_lane * 4)

    if block_m is None:
        block_m = _auto_block_m(M, D, O_lane, x_itemsize, out_itemsize,
                                fixed_bytes)
    block_m = max(32, (block_m // 32) * 32)  # sublane-safe for f32/bf16/int8

    M_pad = _round_up(M, block_m)

    x2d = x.reshape(M, D)
    if M_pad != M:
        # Zero rows are harmless (var + eps > 0, outputs discarded below).
        x2d = jnp.pad(x2d, ((0, M_pad - M), (0, 0)))
    g2d = gamma.reshape(1, D).astype(compute_dtype)
    b2d = beta.reshape(1, D).astype(compute_dtype)

    vmem_limit = int(min(
        max(32 << 20,
            fixed_bytes
            + _per_tile_bytes(block_m, D, O_lane, x_itemsize, out_itemsize)
            + (8 << 20)),
        _VMEM_LIMIT_CAP))

    grid = (M_pad // block_m,)

    y2d = pl.pallas_call(
        _patch_proj_kernel,
        out_shape=jax.ShapeDtypeStruct((M_pad, O_out), x.dtype),
        grid_spec=pltpu.PrefetchScalarGridSpec(
            num_scalar_prefetch=0,
            grid=grid,
            in_specs=[
                pl.BlockSpec((block_m, D), lambda i: (i, 0)),  # x (streamed)
                pl.BlockSpec((1, D), lambda i: (0, 0)),        # gamma (resident)
                pl.BlockSpec((1, D), lambda i: (0, 0)),        # beta  (resident)
                pl.BlockSpec((D, O_out), lambda i: (0, 0)),    # weight (resident)
            ],
            out_specs=pl.BlockSpec((block_m, O_out), lambda i: (i, 0)),
        ),
        compiler_params=pltpu.CompilerParams(
            dimension_semantics=("parallel",),
            vmem_limit_bytes=vmem_limit),
    )(x2d, g2d, b2d, w_t)

    if M_pad != M:
        y2d = y2d[:M]
    if pad_o:
        y2d = y2d[:, :O]

    # Channel-major columns: b (h w) (c ph pw) -> b c (h ph) (w pw)   (JAX glue)
    y = y2d.reshape(B, n_patches, n_patches, channels, patch_size, patch_size)
    y = jnp.transpose(y, (0, 3, 1, 4, 2, 5))  # b c h ph w pw
    return y.reshape(B, channels, n_patches * patch_size, n_patches * patch_size)


def _reference(x, gamma, beta, w_t, *, sample_size, patch_size, channels):
    """Pure-JAX reference (f32 math, full-precision matmul, original einops
    (ph pw c) ordering) for numerical checks."""
    xf = x.astype(jnp.float32)
    mean = jnp.mean(xf, axis=-1, keepdims=True)
    var = jnp.mean((xf - mean) ** 2, axis=-1, keepdims=True)
    xn = (xf - mean) * jax.lax.rsqrt(var + 1e-5) * gamma.astype(jnp.float32) \
        + beta.astype(jnp.float32)
    h = xn * jax.nn.sigmoid(xn)
    y2d = jnp.dot(h, w_t.astype(jnp.float32),
                  precision=jax.lax.Precision.HIGHEST)
    B, N, _ = x.shape
    n_patches = sample_size // patch_size
    y = y2d.reshape(B, n_patches, n_patches, patch_size, patch_size, channels)
    y = jnp.transpose(y, (0, 5, 1, 3, 2, 4))
    return y.reshape(B, channels, sample_size, sample_size).astype(x.dtype)


if __name__ == "__main__":
    # Config consistent with the module:
    #   sample_size=16, patch_size=2 -> n_patches=8, N=64 tokens
    #   d_model=32, channels=3 -> O = 3*2*2 = 12
    sample_size = 16
    patch_size = 2
    channels = 3
    d_model = 32
    batch = 2
    n_patches = sample_size // patch_size
    N = n_patches * n_patches
    O = channels * patch_size * patch_size

    key = jax.random.PRNGKey(0)
    kx, kw = jax.random.split(key)

    x = jax.random.normal(kx, (batch, N, d_model), dtype=jnp.float32)
    gamma = jnp.ones((d_model,), dtype=jnp.float32)   # nn.LayerNorm default init
    beta = jnp.zeros((d_model,), dtype=jnp.float32)
    # nn.Linear(d_model, O, bias=False): weight shape (O, d_model); the kernel
    # consumes it pre-transposed as (d_model, O).
    w = jax.random.normal(kw, (O, d_model), dtype=jnp.float32) * (d_model ** -0.5)
    w_t = w.T

    fn = functools.partial(patch_proj_out, sample_size=sample_size,
                           patch_size=patch_size, channels=channels)
    ref_fn = functools.partial(_reference, sample_size=sample_size,
                               patch_size=patch_size, channels=channels)

    # 1) f32 path.
    out = jax.block_until_ready(fn(x, gamma, beta, w_t))
    ref = ref_fn(x, gamma, beta, w_t)
    assert out.shape == (batch, channels, sample_size, sample_size), out.shape
    assert jnp.allclose(out, ref, atol=5e-3, rtol=5e-3), "f32 mismatch vs reference"

    # 2) bf16 activations (recommended path): bf16 element math + bf16 MXU;
    #    the wrapper auto-casts the f32 weight to bf16.
    x_bf = x.astype(jnp.bfloat16)
    out_bf = jax.block_until_ready(fn(x_bf, gamma, beta, w_t))
    ref_bf = ref_fn(x_bf, gamma, beta, w_t.astype(jnp.bfloat16))
    assert out_bf.dtype == jnp.bfloat16, out_bf.dtype
    assert out_bf.shape == (batch, channels, sample_size, sample_size), out_bf.shape
    assert jnp.allclose(out_bf.astype(jnp.float32), ref_bf.astype(jnp.float32),
                        atol=3e-2, rtol=3e-2), "bf16 mismatch vs reference"

    # 3) Token count not divisible by the tile -> exercises cdiv + zero-pad path.
    batch3 = 3
    x3 = jax.random.normal(jax.random.PRNGKey(1), (batch3, N, d_model),
                           dtype=jnp.float32)
    out3 = jax.block_until_ready(fn(x3, gamma, beta, w_t))
    ref3 = ref_fn(x3, gamma, beta, w_t)
    assert out3.shape == (batch3, channels, sample_size, sample_size), out3.shape
    assert jnp.allclose(out3, ref3, atol=5e-3, rtol=5e-3), "padded-grid mismatch"

    # 4) Larger patch: O = 3*8*8 = 192 (>= 64, not a multiple of 128) ->
    #    exercises lane-dense O padding + channel-major column permutation,
    #    with non-trivial LayerNorm affine params.
    ps4, ch4, d4 = 8, 3, 64
    np4 = sample_size // ps4
    N4 = np4 * np4
    O4 = ch4 * ps4 * ps4
    k4x, k4w = jax.random.split(jax.random.PRNGKey(2))
    x4 = jax.random.normal(k4x, (batch, N4, d4), dtype=jnp.float32)
    g4 = 1.0 + 0.1 * jax.random.normal(jax.random.PRNGKey(3), (d4,), dtype=jnp.float32)
    b4 = 0.1 * jax.random.normal(jax.random.PRNGKey(4), (d4,), dtype=jnp.float32)
    w4 = jax.random.normal(k4w, (O4, d4), dtype=jnp.float32) * (d4 ** -0.5)
    out4 = jax.block_until_ready(
        patch_proj_out(x4, g4, b4, w4.T, sample_size=sample_size,
                       patch_size=ps4, channels=ch4))
    ref4 = _reference(x4, g4, b4, w4.T, sample_size=sample_size,
                      patch_size=ps4, channels=ch4)
    assert out4.shape == (batch, ch4, sample_size, sample_size), out4.shape
    assert jnp.allclose(out4, ref4, atol=5e-3, rtol=5e-3), "O-padded-path mismatch"

    print("KERNEL_OK")
</pallas_src>

<mosaic_0001>
module attributes {stable_mosaic.version = 11 : i64} {
  func.func @_patch_proj_kernel(%arg0: i32, %arg1: memref<128x32xf32, #tpu.memory_space<vmem>>, %arg2: memref<1x32xf32, #tpu.memory_space<vmem>>, %arg3: memref<1x32xf32, #tpu.memory_space<vmem>>, %arg4: memref<32x12xf32, #tpu.memory_space<vmem>>, %arg5: memref<128x12xf32, #tpu.memory_space<vmem>>) attributes {dimension_semantics = [#tpu.dimension_semantics<parallel>], iteration_bounds = array<i64: 1>, scalar_prefetch = 0 : i64, scratch_operands = 0 : i64, tpu.core_type = #tpu.core_type<tc>, window_params = [{transform_indices = @transform_0, window_bounds = array<i64: 128, 32>}, {pipeline_mode = #tpu.pipeline_mode<synchronous>, transform_indices = @transform_1, window_bounds = array<i64: 1, 32>}, {pipeline_mode = #tpu.pipeline_mode<synchronous>, transform_indices = @transform_2, window_bounds = array<i64: 1, 32>}, {pipeline_mode = #tpu.pipeline_mode<synchronous>, transform_indices = @transform_3, window_bounds = array<i64: 32, 12>}, {transform_indices = @transform_4, window_bounds = array<i64: 128, 12>}]} {
    %c0 = arith.constant 0 : index
    %c0_0 = arith.constant 0 : index
    %0 = vector.load %arg1[%c0, %c0_0] : memref<128x32xf32, #tpu.memory_space<vmem>>, vector<128x32xf32>
    %cst = arith.constant dense<0.000000e+00> : vector<128xf32>
    %1 = vector.multi_reduction <add>, %0, %cst [1] : vector<128x32xf32> to vector<128xf32>
    %2 = vector.shape_cast %1 : vector<128xf32> to vector<128x1xf32>
    %3 = arith.mulf %0, %0 : vector<128x32xf32>
    %cst_1 = arith.constant dense<0.000000e+00> : vector<128xf32>
    %4 = vector.multi_reduction <add>, %3, %cst_1 [1] : vector<128x32xf32> to vector<128xf32>
    %5 = vector.shape_cast %4 : vector<128xf32> to vector<128x1xf32>
    %cst_2 = arith.constant 3.125000e-02 : f32
    %6 = vector.broadcast %cst_2 : f32 to vector<128x1xf32>
    %7 = arith.mulf %2, %6 : vector<128x1xf32>
    %cst_3 = arith.constant 3.125000e-02 : f32
    %8 = vector.broadcast %cst_3 : f32 to vector<128x1xf32>
    %9 = arith.mulf %5, %8 : vector<128x1xf32>
    %10 = arith.mulf %7, %7 : vector<128x1xf32>
    %11 = arith.subf %9, %10 : vector<128x1xf32>
    %cst_4 = arith.constant 0.000000e+00 : f32
    %12 = vector.broadcast %cst_4 : f32 to vector<128x1xf32>
    %13 = arith.maximumf %11, %12 : vector<128x1xf32>
    %cst_5 = arith.constant 9.99999974E-6 : f32
    %14 = vector.broadcast %cst_5 : f32 to vector<128x1xf32>
    %15 = arith.addf %13, %14 : vector<128x1xf32>
    %16 = math.rsqrt %15 : vector<128x1xf32>
    %c0_6 = arith.constant 0 : index
    %c0_7 = arith.constant 0 : index
    %17 = vector.load %arg1[%c0_6, %c0_7] : memref<128x32xf32, #tpu.memory_space<vmem>>, vector<128x32xf32>
    %18 = vector.broadcast %7 : vector<128x1xf32> to vector<128x32xf32>
    %19 = arith.subf %17, %18 : vector<128x32xf32>
    %20 = vector.broadcast %16 : vector<128x1xf32> to vector<128x32xf32>
    %21 = arith.mulf %19, %20 : vector<128x32xf32>
    %c0_8 = arith.constant 0 : index
    %c0_9 = arith.constant 0 : index
    %22 = vector.load %arg2[%c0_8, %c0_9] : memref<1x32xf32, #tpu.memory_space<vmem>>, vector<1x32xf32>
    %23 = vector.broadcast %22 : vector<1x32xf32> to vector<128x32xf32>
    %24 = arith.mulf %21, %23 : vector<128x32xf32>
    %c0_10 = arith.constant 0 : index
    %c0_11 = arith.constant 0 : index
    %25 = vector.load %arg3[%c0_10, %c0_11] : memref<1x32xf32, #tpu.memory_space<vmem>>, vector<1x32xf32>
    %26 = vector.broadcast %25 : vector<1x32xf32> to vector<128x32xf32>
    %27 = arith.addf %24, %26 : vector<128x32xf32>
    %28 = arith.negf %27 : vector<128x32xf32>
    %29 = math.exp %28 : vector<128x32xf32>
    %cst_12 = arith.constant 1.000000e+00 : f32
    %30 = vector.broadcast %cst_12 : f32 to vector<128x32xf32>
    %31 = arith.addf %30, %29 : vector<128x32xf32>
    %32 = arith.divf %30, %31 : vector<128x32xf32>
    %33 = arith.mulf %27, %32 : vector<128x32xf32>
    %c0_13 = arith.constant 0 : index
    %c0_14 = arith.constant 0 : index
    %34 = vector.load %arg4[%c0_13, %c0_14] : memref<32x12xf32, #tpu.memory_space<vmem>>, vector<32x12xf32>
    %cst_15 = arith.constant dense<0.000000e+00> : vector<128x12xf32>
    %35 = tpu.matmul %33, %34, %cst_15 {dimension_numbers = #tpu.dot_dimension_numbers<[1], [0], [0], [1], [0, 0, 1, 1], [], []>} : vector<128x32xf32>, vector<32x12xf32>, vector<128x12xf32> -> vector<128x12xf32>
    %c0_16 = arith.constant 0 : index
    %c0_17 = arith.constant 0 : index
    %36 = vector.load %arg5[%c0_16, %c0_17] : memref<128x12xf32, #tpu.memory_space<vmem>>, vector<128x12xf32>
    tpu.vector_store %arg5[%c0_16, %c0_17], %35 {strides = array<i32>} : memref<128x12xf32, #tpu.memory_space<vmem>>, vector<128x12xf32>,
    return
  }
  func.func @transform_0(%arg0: i32) -> (i32, i32) {
    %c0_i32 = arith.constant 0 : i32
    %c0_i32_0 = arith.constant 0 : i32
    return %arg0, %c0_i32 : i32, i32
  }
  func.func @transform_1(%arg0: i32) -> (i32, i32) {
    %c0_i32 = arith.constant 0 : i32
    %c0_i32_0 = arith.constant 0 : i32
    %c0_i32_1 = arith.constant 0 : i32
    return %c0_i32, %c0_i32_0 : i32, i32
  }
  func.func @transform_2(%arg0: i32) -> (i32, i32) {
    %c0_i32 = arith.constant 0 : i32
    %c0_i32_0 = arith.constant 0 : i32
    %c0_i32_1 = arith.constant 0 : i32
    return %c0_i32, %c0_i32_0 : i32, i32
  }
  func.func @transform_3(%arg0: i32) -> (i32, i32) {
    %c0_i32 = arith.constant 0 : i32
    %c0_i32_0 = arith.constant 0 : i32
    %c0_i32_1 = arith.constant 0 : i32
    return %c0_i32, %c0_i32_0 : i32, i32
  }
  func.func @transform_4(%arg0: i32) -> (i32, i32) {
    %c0_i32 = arith.constant 0 : i32
    %c0_i32_0 = arith.constant 0 : i32
    return %arg0, %c0_i32 : i32, i32
  }
}

</mosaic_0001>

<llo_original>
// kernel: tpu_custom_call.1
$region0: #{tpu_custom_call.1}
  #allocation0 [shape = 'u32[]', space=smem, size = 0x4, offset = 0x4, fixed_abs, tag = 'smem constant byte address 0x4 - core index']
  #allocation1 [shape = 'u32[144,128]{1,0:T(1,128)}', space=vmem, size = 0x12000, scoped, tag = 'internal scratch']
  %s0 = inlined_call_operand.vmem [shape: f32[128,32], index: 0, kind: input, shape index: {}]
  %s1 = inlined_call_operand.vmem [shape: f32[1,32], index: 1, kind: input, shape index: {}]
  %s2 = inlined_call_operand.vmem [shape: f32[1,32], index: 2, kind: input, shape index: {}]
  %s3 = inlined_call_operand.vmem [shape: f32[32,12], index: 3, kind: input, shape index: {}]
  %s4 = inlined_call_operand.vmem [shape: f32[128,12], index: 4, kind: output, shape index: {}]
  %s5 = sld [smem:[#allocation0]]
  $region26: #{tpu_custom_call.1} parent=0
    _
  %s7 = ssub.s32 1, %s5
  %s8 = scalar_select 0, %s7, %s5
  // Predicated region
  $region2: #{tpu_custom_call.1} parent=0 // pred_check
    _
  $region3: #{tpu_custom_call.1} parent=0 // pred_check_branch
    %10 = sbr.rel (0) target = $region5
  $region4: #{tpu_custom_call.1} parent=0 // pred_region
    _
  $region5: #{tpu_custom_call.1} parent=0 // pred_fallthru
    _
  // Predicated region
  $region6: #{tpu_custom_call.1} parent=0 // pred_check
    _
  $region7: #{tpu_custom_call.1} parent=0 // pred_check_branch
    %12 = sbr.rel (0) target = $region9
  $region8: #{tpu_custom_call.1} parent=0 // pred_region
    _
  $region9: #{tpu_custom_call.1} parent=0 // pred_fallthru
    _
  // Predicated region
  $region10: #{tpu_custom_call.1} parent=0 // pred_check
    _
  $region11: #{tpu_custom_call.1} parent=0 // pred_check_branch
    %14 = sbr.rel (0) target = $region13
  $region12: #{tpu_custom_call.1} parent=0 // pred_region
    _
  $region13: #{tpu_custom_call.1} parent=0 // pred_fallthru
    _
  // Predicated region
  $region14: #{tpu_custom_call.1} parent=0 // pred_check
    _
  $region15: #{tpu_custom_call.1} parent=0 // pred_check_branch
    %16 = sbr.rel (0) target = $region17
  $region16: #{tpu_custom_call.1} parent=0 // pred_region
    _
  $region17: #{tpu_custom_call.1} parent=0 // pred_fallthru
    _
  %v17 = vld [vmem:[%s0] sm:$0xff]
  %v18 = vld [vmem:[%s0 + $0x8] sm:$0xff]
  %v19 = vld [vmem:[%s0 + $0x10] sm:$0xff]
  %v20 = vld [vmem:[%s0 + $0x18] sm:$0xff]
  %v21 = vld [vmem:[%s0 + $0x20] sm:$0xff]
  %v22 = vld [vmem:[%s0 + $0x28] sm:$0xff]
  %v23 = vld [vmem:[%s0 + $0x30] sm:$0xff]
  %v24 = vld [vmem:[%s0 + $0x38] sm:$0xff]
  %v25 = vld [vmem:[%s0 + $0x40] sm:$0xff]
  %v26 = vld [vmem:[%s0 + $0x48] sm:$0xff]
  %v27 = vld [vmem:[%s0 + $0x50] sm:$0xff]
  %v28 = vld [vmem:[%s0 + $0x58] sm:$0xff]
  %v29 = vld [vmem:[%s0 + $0x60] sm:$0xff]
  %v30 = vld [vmem:[%s0 + $0x68] sm:$0xff]
  %v31 = vld [vmem:[%s0 + $0x70] sm:$0xff]
  %v32 = vld [vmem:[%s0 + $0x78] sm:$0xff]
  %vm33 = vcmask 261120
  %v34 = vsel %vm33, %v17, 0.0
  %35 = vadd.xlane.f32.xlu0 %v34
  %v36 = vpop.xlane.xlu0 %35
  %v37 = vsel %vm33, %v18, 0.0
  %38 = vadd.xlane.f32.xlu0 %v37
  %v39 = vpop.xlane.xlu0 %38
  %v40 = vsel %vm33, %v19, 0.0
  %41 = vadd.xlane.f32.xlu0 %v40
  %v42 = vpop.xlane.xlu0 %41
  %v43 = vsel %vm33, %v20, 0.0
  %44 = vadd.xlane.f32.xlu0 %v43
  %v45 = vpop.xlane.xlu0 %44
  %v46 = vsel %vm33, %v21, 0.0
  %47 = vadd.xlane.f32.xlu0 %v46
  %v48 = vpop.xlane.xlu0 %47
  %v49 = vsel %vm33, %v22, 0.0
  %50 = vadd.xlane.f32.xlu0 %v49
  %v51 = vpop.xlane.xlu0 %50
  %v52 = vsel %vm33, %v23, 0.0
  %53 = vadd.xlane.f32.xlu0 %v52
  %v54 = vpop.xlane.xlu0 %53
  %v55 = vsel %vm33, %v24, 0.0
  %56 = vadd.xlane.f32.xlu0 %v55
  %v57 = vpop.xlane.xlu0 %56
  %v58 = vsel %vm33, %v25, 0.0
  %59 = vadd.xlane.f32.xlu0 %v58
  %v60 = vpop.xlane.xlu0 %59
  %v61 = vsel %vm33, %v26, 0.0
  %62 = vadd.xlane.f32.xlu0 %v61
  %v63 = vpop.xlane.xlu0 %62
  %v64 = vsel %vm33, %v27, 0.0
  %65 = vadd.xlane.f32.xlu0 %v64
  %v66 = vpop.xlane.xlu0 %65
  %v67 = vsel %vm33, %v28, 0.0
  %68 = vadd.xlane.f32.xlu0 %v67
  %v69 = vpop.xlane.xlu0 %68
  %v70 = vsel %vm33, %v29, 0.0
  %71 = vadd.xlane.f32.xlu0 %v70
  %v72 = vpop.xlane.xlu0 %71
  %v73 = vsel %vm33, %v30, 0.0
  %74 = vadd.xlane.f32.xlu0 %v73
  %v75 = vpop.xlane.xlu0 %74
  %v76 = vsel %vm33, %v31, 0.0
  %77 = vadd.xlane.f32.xlu0 %v76
  %v78 = vpop.xlane.xlu0 %77
  %v79 = vsel %vm33, %v32, 0.0
  %80 = vadd.xlane.f32.xlu0 %v79
  %v81 = vpop.xlane.xlu0 %80
  %v82 = vmul.f32 %v17, %v17
  %v83 = vmul.f32 %v18, %v18
  %v84 = vmul.f32 %v19, %v19
  %v85 = vmul.f32 %v20, %v20
  %v86 = vmul.f32 %v21, %v21
  %v87 = vmul.f32 %v22, %v22
  %v88 = vmul.f32 %v23, %v23
  %v89 = vmul.f32 %v24, %v24
  %v90 = vmul.f32 %v25, %v25
  %v91 = vmul.f32 %v26, %v26
  %v92 = vmul.f32 %v27, %v27
  %v93 = vmul.f32 %v28, %v28
  %v94 = vmul.f32 %v29, %v29
  %v95 = vmul.f32 %v30, %v30
  %v96 = vmul.f32 %v31, %v31
  %v97 = vmul.f32 %v32, %v32
  %v98 = vsel %vm33, %v82, 0.0
  %99 = vadd.xlane.f32.xlu0 %v98
  %v100 = vpop.xlane.xlu0 %99
  %v101 = vsel %vm33, %v83, 0.0
  %102 = vadd.xlane.f32.xlu0 %v101
  %v103 = vpop.xlane.xlu0 %102
  %v104 = vsel %vm33, %v84, 0.0
  %105 = vadd.xlane.f32.xlu0 %v104
  %v106 = vpop.xlane.xlu0 %105
  %v107 = vsel %vm33, %v85, 0.0
  %108 = vadd.xlane.f32.xlu0 %v107
  %v109 = vpop.xlane.xlu0 %108
  %v110 = vsel %vm33, %v86, 0.0
  %111 = vadd.xlane.f32.xlu0 %v110
  %v112 = vpop.xlane.xlu0 %111
  %v113 = vsel %vm33, %v87, 0.0
  %114 = vadd.xlane.f32.xlu0 %v113
  %v115 = vpop.xlane.xlu0 %114
  %v116 = vsel %vm33, %v88, 0.0
  %117 = vadd.xlane.f32.xlu0 %v116
  %v118 = vpop.xlane.xlu0 %117
  %v119 = vsel %vm33, %v89, 0.0
  %120 = vadd.xlane.f32.xlu0 %v119
  %v121 = vpop.xlane.xlu0 %120
  %v122 = vsel %vm33, %v90, 0.0
  %123 = vadd.xlane.f32.xlu0 %v122
  %v124 = vpop.xlane.xlu0 %123
  %v125 = vsel %vm33, %v91, 0.0
  %126 = vadd.xlane.f32.xlu0 %v125
  %v127 = vpop.xlane.xlu0 %126
  %v128 = vsel %vm33, %v92, 0.0
  %129 = vadd.xlane.f32.xlu0 %v128
  %v130 = vpop.xlane.xlu0 %129
  %v131 = vsel %vm33, %v93, 0.0
  %132 = vadd.xlane.f32.xlu0 %v131
  %v133 = vpop.xlane.xlu0 %132
  %v134 = vsel %vm33, %v94, 0.0
  %135 = vadd.xlane.f32.xlu0 %v134
  %v136 = vpop.xlane.xlu0 %135
  %v137 = vsel %vm33, %v95, 0.0
  %138 = vadd.xlane.f32.xlu0 %v137
  %v139 = vpop.xlane.xlu0 %138
  %v140 = vsel %vm33, %v96, 0.0
  %141 = vadd.xlane.f32.xlu0 %v140
  %v142 = vpop.xlane.xlu0 %141
  %v143 = vsel %vm33, %v97, 0.0
  %144 = vadd.xlane.f32.xlu0 %v143
  %v145 = vpop.xlane.xlu0 %144
  %v146 = vmul.f32 %v36, 0.03125
  %v147 = vmul.f32 %v39, 0.03125
  %v148 = vmul.f32 %v42, 0.03125
  %v149 = vmul.f32 %v45, 0.03125
  %v150 = vmul.f32 %v48, 0.03125
  %v151 = vmul.f32 %v51, 0.03125
  %v152 = vmul.f32 %v54, 0.03125
  %v153 = vmul.f32 %v57, 0.03125
  %v154 = vmul.f32 %v60, 0.03125
  %v155 = vmul.f32 %v63, 0.03125
  %v156 = vmul.f32 %v66, 0.03125
  %v157 = vmul.f32 %v69, 0.03125
  %v158 = vmul.f32 %v72, 0.03125
  %v159 = vmul.f32 %v75, 0.03125
  %v160 = vmul.f32 %v78, 0.03125
  %v161 = vmul.f32 %v81, 0.03125
  %v162 = vmul.f32 %v100, 0.03125
  %v163 = vmul.f32 %v103, 0.03125
  %v164 = vmul.f32 %v106, 0.03125
  %v165 = vmul.f32 %v109, 0.03125
  %v166 = vmul.f32 %v112, 0.03125
  %v167 = vmul.f32 %v115, 0.03125
  %v168 = vmul.f32 %v118, 0.03125
  %v169 = vmul.f32 %v121, 0.03125
  %v170 = vmul.f32 %v124, 0.03125
  %v171 = vmul.f32 %v127, 0.03125
  %v172 = vmul.f32 %v130, 0.03125
  %v173 = vmul.f32 %v133, 0.03125
  %v174 = vmul.f32 %v136, 0.03125
  %v175 = vmul.f32 %v139, 0.03125
  %v176 = vmul.f32 %v142, 0.03125
  %v177 = vmul.f32 %v145, 0.03125
  %v178 = vmul.f32 %v146, %v146
  %v179 = vmul.f32 %v147, %v147
  %v180 = vmul.f32 %v148, %v148
  %v181 = vmul.f32 %v149, %v149
  %v182 = vmul.f32 %v150, %v150
  %v183 = vmul.f32 %v151, %v151
  %v184 = vmul.f32 %v152, %v152
  %v185 = vmul.f32 %v153, %v153
  %v186 = vmul.f32 %v154, %v154
  %v187 = vmul.f32 %v155, %v155
  %v188 = vmul.f32 %v156, %v156
  %v189 = vmul.f32 %v157, %v157
  %v190 = vmul.f32 %v158, %v158
  %v191 = vmul.f32 %v159, %v159
  %v192 = vmul.f32 %v160, %v160
  %v193 = vmul.f32 %v161, %v161
  %v194 = vsub.f32 %v162, %v178
  %v195 = vsub.f32 %v163, %v179
  %v196 = vsub.f32 %v164, %v180
  %v197 = vsub.f32 %v165, %v181
  %v198 = vsub.f32 %v166, %v182
  %v199 = vsub.f32 %v167, %v183
  %v200 = vsub.f32 %v168, %v184
  %v201 = vsub.f32 %v169, %v185
  %v202 = vsub.f32 %v170, %v186
  %v203 = vsub.f32 %v171, %v187
  %v204 = vsub.f32 %v172, %v188
  %v205 = vsub.f32 %v173, %v189
  %v206 = vsub.f32 %v174, %v190
  %v207 = vsub.f32 %v175, %v191
  %v208 = vsub.f32 %v176, %v192
  %v209 = vsub.f32 %v177, %v193
  %v210 = vmax.f32 %v194, 0.0
  %v211 = vmax.f32 %v195, 0.0
  %v212 = vmax.f32 %v196, 0.0
  %v213 = vmax.f32 %v197, 0.0
  %v214 = vmax.f32 %v198, 0.0
  %v215 = vmax.f32 %v199, 0.0
  %v216 = vmax.f32 %v200, 0.0
  %v217 = vmax.f32 %v201, 0.0
  %v218 = vmax.f32 %v202, 0.0
  %v219 = vmax.f32 %v203, 0.0
  %v220 = vmax.f32 %v204, 0.0
  %v221 = vmax.f32 %v205, 0.0
  %v222 = vmax.f32 %v206, 0.0
  %v223 = vmax.f32 %v207, 0.0
  %v224 = vmax.f32 %v208, 0.0
  %v225 = vmax.f32 %v209, 0.0
  %v226 = vadd.f32 %v210, 1e-05
  %v227 = vadd.f32 %v211, 1e-05
  %v228 = vadd.f32 %v212, 1e-05
  %v229 = vadd.f32 %v213, 1e-05
  %v230 = vadd.f32 %v214, 1e-05
  %v231 = vadd.f32 %v215, 1e-05
  %v232 = vadd.f32 %v216, 1e-05
  %v233 = vadd.f32 %v217, 1e-05
  %v234 = vadd.f32 %v218, 1e-05
  %v235 = vadd.f32 %v219, 1e-05
  %v236 = vadd.f32 %v220, 1e-05
  %v237 = vadd.f32 %v221, 1e-05
  %v238 = vadd.f32 %v222, 1e-05
  %v239 = vadd.f32 %v223, 1e-05
  %v240 = vadd.f32 %v224, 1e-05
  %v241 = vadd.f32 %v225, 1e-05
  %v242 = vrsqrt.pop %v226
  %v243 = vrsqrt.pop %v227
  %v244 = vrsqrt.pop %v228
  %v245 = vrsqrt.pop %v229
  %v246 = vrsqrt.pop %v230
  %v247 = vrsqrt.pop %v231
  %v248 = vrsqrt.pop %v232
  %v249 = vrsqrt.pop %v233
  %v250 = vrsqrt.pop %v234
  %v251 = vrsqrt.pop %v235
  %v252 = vrsqrt.pop %v236
  %v253 = vrsqrt.pop %v237
  %v254 = vrsqrt.pop %v238
  %v255 = vrsqrt.pop %v239
  %v256 = vrsqrt.pop %v240
  %v257 = vrsqrt.pop %v241
  %v258 = vsub.f32 %v17, %v146
  %v259 = vsub.f32 %v18, %v147
  %v260 = vsub.f32 %v19, %v148
  %v261 = vsub.f32 %v20, %v149
  %v262 = vsub.f32 %v21, %v150
  %v263 = vsub.f32 %v22, %v151
  %v264 = vsub.f32 %v23, %v152
  %v265 = vsub.f32 %v24, %v153
  %v266 = vsub.f32 %v25, %v154
  %v267 = vsub.f32 %v26, %v155
  %v268 = vsub.f32 %v27, %v156
  %v269 = vsub.f32 %v28, %v157
  %v270 = vsub.f32 %v29, %v158
  %v271 = vsub.f32 %v30, %v159
  %v272 = vsub.f32 %v31, %v160
  %v273 = vsub.f32 %v32, %v161
  %v274 = vmul.f32 %v258, %v242
  %v275 = vmul.f32 %v259, %v243
  %v276 = vmul.f32 %v260, %v244
  %v277 = vmul.f32 %v261, %v245
  %v278 = vmul.f32 %v262, %v246
  %v279 = vmul.f32 %v263, %v247
  %v280 = vmul.f32 %v264, %v248
  %v281 = vmul.f32 %v265, %v249
  %v282 = vmul.f32 %v266, %v250
  %v283 = vmul.f32 %v267, %v251
  %v284 = vmul.f32 %v268, %v252
  %v285 = vmul.f32 %v269, %v253
  %v286 = vmul.f32 %v270, %v254
  %v287 = vmul.f32 %v271, %v255
  %v288 = vmul.f32 %v272, %v256
  %v289 = vmul.f32 %v273, %v257
  %v290 = vld [vmem:[%s1] sm:$0x1]
  %v292 = vlaneseq
  %v293 = vshrl.u32 %v292, 7
  %v294 = vsub.s32 0, %v293
  %v295 = vrot.slane %v290, %v294
  %v297 = vmul.f32 %v274, %v295
  %v298 = vmul.f32 %v275, %v295
  %v299 = vmul.f32 %v276, %v295
  %v300 = vmul.f32 %v277, %v295
  %v301 = vmul.f32 %v278, %v295
  %v302 = vmul.f32 %v279, %v295
  %v303 = vmul.f32 %v280, %v295
  %v304 = vmul.f32 %v281, %v295
  %v305 = vmul.f32 %v282, %v295
  %v306 = vmul.f32 %v283, %v295
  %v307 = vmul.f32 %v284, %v295
  %v308 = vmul.f32 %v285, %v295
  %v309 = vmul.f32 %v286, %v295
  %v310 = vmul.f32 %v287, %v295
  %v311 = vmul.f32 %v288, %v295
  %v312 = vmul.f32 %v289, %v295
  %v313 = vld [vmem:[%s2] sm:$0x1]
  %v315 = vlaneseq
  %v316 = vshrl.u32 %v315, 7
  %v317 = vsub.s32 0, %v316
  %v318 = vrot.slane %v313, %v317
  %v320 = vadd.f32 %v297, %v318
  %v321 = vadd.f32 %v298, %v318
  %v322 = vadd.f32 %v299, %v318
  %v323 = vadd.f32 %v300, %v318
  %v324 = vadd.f32 %v301, %v318
  %v325 = vadd.f32 %v302, %v318
  %v326 = vadd.f32 %v303, %v318
  %v327 = vadd.f32 %v304, %v318
  %v328 = vadd.f32 %v305, %v318
  %v329 = vadd.f32 %v306, %v318
  %v330 = vadd.f32 %v307, %v318
  %v331 = vadd.f32 %v308, %v318
  %v332 = vadd.f32 %v309, %v318
  %v333 = vadd.f32 %v310, %v318
  %v334 = vadd.f32 %v311, %v318
  %v335 = vadd.f32 %v312, %v318
  %v336 = vxor.u32 %v320, 2147483648
  %v337 = vxor.u32 %v321, 2147483648
  %v338 = vxor.u32 %v322, 2147483648
  %v339 = vxor.u32 %v323, 2147483648
  %v340 = vxor.u32 %v324, 2147483648
  %v341 = vxor.u32 %v325, 2147483648
  %v342 = vxor.u32 %v326, 2147483648
  %v343 = vxor.u32 %v327, 2147483648
  %v344 = vxor.u32 %v328, 2147483648
  %v345 = vxor.u32 %v329, 2147483648
  %v346 = vxor.u32 %v330, 2147483648
  %v347 = vxor.u32 %v331, 2147483648
  %v348 = vxor.u32 %v332, 2147483648
  %v349 = vxor.u32 %v333, 2147483648
  %v350 = vxor.u32 %v334, 2147483648
  %v351 = vxor.u32 %v335, 2147483648
  %v352 = vmul.f32 %v336, 1.442695
  %v353 = vpow.pop %v352
  %v354 = vmul.f32 %v337, 1.442695
  %v355 = vpow.pop %v354
  %v356 = vmul.f32 %v338, 1.442695
  %v357 = vpow.pop %v356
  %v358 = vmul.f32 %v339, 1.442695
  %v359 = vpow.pop %v358
  %v360 = vmul.f32 %v340, 1.442695
  %v361 = vpow.pop %v360
  %v362 = vmul.f32 %v341, 1.442695
  %v363 = vpow.pop %v362
  %v364 = vmul.f32 %v342, 1.442695
  %v365 = vpow.pop %v364
  %v366 = vmul.f32 %v343, 1.442695
  %v367 = vpow.pop %v366
  %v368 = vmul.f32 %v344, 1.442695
  %v369 = vpow.pop %v368
  %v370 = vmul.f32 %v345, 1.442695
  %v371 = vpow.pop %v370
  %v372 = vmul.f32 %v346, 1.442695
  %v373 = vpow.pop %v372
  %v374 = vmul.f32 %v347, 1.442695
  %v375 = vpow.pop %v374
  %v376 = vmul.f32 %v348, 1.442695
  %v377 = vpow.pop %v376
  %v378 = vmul.f32 %v349, 1.442695
  %v379 = vpow.pop %v378
  %v380 = vmul.f32 %v350, 1.442695
  %v381 = vpow.pop %v380
  %v382 = vmul.f32 %v351, 1.442695
  %v383 = vpow.pop %v382
  %v384 = vadd.f32 %v353, 1.0
  %v385 = vadd.f32 %v355, 1.0
  %v386 = vadd.f32 %v357, 1.0
  %v387 = vadd.f32 %v359, 1.0
  %v388 = vadd.f32 %v361, 1.0
  %v389 = vadd.f32 %v363, 1.0
  %v390 = vadd.f32 %v365, 1.0
  %v391 = vadd.f32 %v367, 1.0
  %v392 = vadd.f32 %v369, 1.0
  %v393 = vadd.f32 %v371, 1.0
  %v394 = vadd.f32 %v373, 1.0
  %v395 = vadd.f32 %v375, 1.0
  %v396 = vadd.f32 %v377, 1.0
  %v397 = vadd.f32 %v379, 1.0
  %v398 = vadd.f32 %v381, 1.0
  %v399 = vadd.f32 %v383, 1.0
  %v400 = vrcp.pop %v384
  %v401 = vmul.f32 1.0, %v400
  %v402 = vrcp.pop %v385
  %v403 = vmul.f32 1.0, %v402
  %v404 = vrcp.pop %v386
  %v405 = vmul.f32 1.0, %v404
  %v406 = vrcp.pop %v387
  %v407 = vmul.f32 1.0, %v406
  %v408 = vrcp.pop %v388
  %v409 = vmul.f32 1.0, %v408
  %v410 = vrcp.pop %v389
  %v411 = vmul.f32 1.0, %v410
  %v412 = vrcp.pop %v390
  %v413 = vmul.f32 1.0, %v412
  %v414 = vrcp.pop %v391
  %v415 = vmul.f32 1.0, %v414
  %v416 = vrcp.pop %v392
  %v417 = vmul.f32 1.0, %v416
  %v418 = vrcp.pop %v393
  %v419 = vmul.f32 1.0, %v418
  %v420 = vrcp.pop %v394
  %v421 = vmul.f32 1.0, %v420
  %v422 = vrcp.pop %v395
  %v423 = vmul.f32 1.0, %v422
  %v424 = vrcp.pop %v396
  %v425 = vmul.f32 1.0, %v424
  %v426 = vrcp.pop %v397
  %v427 = vmul.f32 1.0, %v426
  %v428 = vrcp.pop %v398
  %v429 = vmul.f32 1.0, %v428
  %v430 = vrcp.pop %v399
  %v431 = vmul.f32 1.0, %v430
  %v432 = vmul.f32 %v320, %v401
  %v433 = vmul.f32 %v321, %v403
  %v434 = vmul.f32 %v322, %v405
  %v435 = vmul.f32 %v323, %v407
  %v436 = vmul.f32 %v324, %v409
  %v437 = vmul.f32 %v325, %v411
  %v438 = vmul.f32 %v326, %v413
  %v439 = vmul.f32 %v327, %v415
  %v440 = vmul.f32 %v328, %v417
  %v441 = vmul.f32 %v329, %v419
  %v442 = vmul.f32 %v330, %v421
  %v443 = vmul.f32 %v331, %v423
  %v444 = vmul.f32 %v332, %v425
  %v445 = vmul.f32 %v333, %v427
  %v446 = vmul.f32 %v334, %v429
  %v447 = vmul.f32 %v335, %v431
  %v448 = vld [vmem:[%s3] sm:$0xff]
  %v449 = vld [vmem:[%s3 + $0x8] sm:$0xff]
  %v450 = vld [vmem:[%s3 + $0x10] sm:$0xff]
  %v451 = vld [vmem:[%s3 + $0x18] sm:$0xff]
  %v453 = vsel %vm33, %v432, 0
  %v456 = vsel %vm33, %v433, 0
  %v459 = vsel %vm33, %v434, 0
  %v462 = vsel %vm33, %v435, 0
  %v465 = vsel %vm33, %v436, 0
  %v468 = vsel %vm33, %v437, 0
  %v471 = vsel %vm33, %v438, 0
  %v474 = vsel %vm33, %v439, 0
  %v477 = vsel %vm33, %v440, 0
  %v480 = vsel %vm33, %v441, 0
  %v483 = vsel %vm33, %v442, 0
  %v486 = vsel %vm33, %v443, 0
  %v489 = vsel %vm33, %v444, 0
  %v492 = vsel %vm33, %v445, 0
  %v495 = vsel %vm33, %v446, 0
  %v498 = vsel %vm33, %v447, 0
  %500 = vmatprep.subr.mxu0 0.0
  %501 = vmatpush1.msra.mxu0 %v448
  %502 = vmatprep.subr.mxu0 0.0
  %503 = vmatpush1.msra.mxu0 %v449
  %504 = vmatprep.subr.mxu0 0.0
  %505 = vmatpush1.msra.mxu0 %v450
  %506 = vmatprep.subr.mxu0 0.0
  %507 = vmatpush1.msra.mxu0 %v451
  %508 = vmatprep.subr.mxu0 0.0
  %509 = vmatpush1.msra.mxu0 0.0
  %510 = vmatprep.subr.mxu0 0.0
  %511 = vmatpush1.msra.mxu0 0.0
  %512 = vmatprep.subr.mxu0 0.0
  %513 = vmatpush1.msra.mxu0 0.0
  %514 = vmatprep.subr.mxu0 0.0
  %515 = vmatpush1.msra.mxu0 0.0
  %516 = vmatprep.subr.mxu0 0.0
  %517 = vmatpush1.msra.mxu0 0.0
  %518 = vmatprep.subr.mxu0 0.0
  %519 = vmatpush1.msra.mxu0 0.0
  %520 = vmatprep.subr.mxu0 0.0
  %521 = vmatpush1.msra.mxu0 0.0
  %522 = vmatprep.subr.mxu0 0.0
  %523 = vmatpush1.msra.mxu0 0.0
  %524 = vmatprep.subr.mxu0 0.0
  %525 = vmatpush1.msra.mxu0 0.0
  %526 = vmatprep.subr.mxu0 0.0
  %527 = vmatpush1.msra.mxu0 0.0
  %528 = vmatprep.subr.mxu0 0.0
  %529 = vmatpush1.msra.mxu0 0.0
  %530 = vmatprep.subr.mxu0 0.0
  %531 = vmatpush1.msra.mxu0 0.0
  %532 = vmatprep.subr.mxu0 0.0
  %533 = vmatpush1.msra.mxu0 0.0
  %534 = vmatprep.subr.mxu0 0.0
  %535 = vmatpush1.msra.mxu0 0.0
  %536 = vmatprep.subr.mxu0 0.0
  %537 = vmatpush1.msra.mxu0 0.0
  %538 = vmatprep.subr.mxu0 0.0
  %539 = vmatpush1.msra.mxu0 0.0
  %540 = vmatprep.subr.mxu0 0.0
  %541 = vmatpush1.msra.mxu0 0.0
  %542 = vmatprep.subr.mxu0 0.0
  %543 = vmatpush1.msra.mxu0 0.0
  %544 = vmatprep.subr.mxu0 0.0
  %545 = vmatpush1.msra.mxu0 0.0
  %546 = vmatprep.subr.mxu0 0.0
  %547 = vmatpush1.msra.mxu0 0.0
  %548 = vmatprep.subr.mxu0 0.0
  %549 = vmatpush1.msra.mxu0 0.0
  %550 = vmatprep.subr.mxu0 0.0
  %551 = vmatpush1.msra.mxu0 0.0
  %552 = vmatprep.subr.mxu0 0.0
  %553 = vmatpush1.msra.mxu0 0.0
  %554 = vmatprep.subr.mxu0 0.0
  %555 = vmatpush1.msra.mxu0 0.0
  %556 = vmatprep.subr.mxu0 0.0
  %557 = vmatpush1.msra.mxu0 0.0
  %558 = vmatprep.subr.mxu0 0.0
  %559 = vmatpush1.msra.mxu0 0.0
  %560 = vmatprep.subr.mxu0 0.0
  %561 = vmatpush1.msra.mxu0 0.0
  %562 = vmatprep.subr.mxu0 0.0
  %563 = vmatpush1.msra.mxu0 0.0
  %564 = vmatprep.mubr.f32.mxu0 0.0
  %565 = vmatmul.mubr.f32.gmra.mrb[0].mxu0 %v453
  %v566 = vpop.f32.mrb[0].mxu0
  %v567 = vadd.f32 0.0, %v566
  %v568 = vpop.f32.mrb[0].mxu0
  %569 = vmatprep.mubr.f32.mxu0 0.0
  %570 = vmatmul.mubr.f32.gmra.mrb[0].mxu0 %v456
  %v571 = vpop.f32.mrb[0].mxu0
  %v572 = vadd.f32 0.0, %v571
  %v573 = vpop.f32.mrb[0].mxu0
  %574 = vmatprep.mubr.f32.mxu0 0.0
  %575 = vmatmul.mubr.f32.gmra.mrb[0].mxu0 %v459
  %v576 = vpop.f32.mrb[0].mxu0
  %v577 = vadd.f32 0.0, %v576
  %v578 = vpop.f32.mrb[0].mxu0
  %579 = vmatprep.mubr.f32.mxu0 0.0
  %580 = vmatmul.mubr.f32.gmra.mrb[0].mxu0 %v462
  %v581 = vpop.f32.mrb[0].mxu0
  %v582 = vadd.f32 0.0, %v581
  %v583 = vpop.f32.mrb[0].mxu0
  %584 = vmatprep.mubr.f32.mxu0 0.0
  %585 = vmatmul.mubr.f32.gmra.mrb[0].mxu0 %v465
  %v586 = vpop.f32.mrb[0].mxu0
  %v587 = vadd.f32 0.0, %v586
  %v588 = vpop.f32.mrb[0].mxu0
  %589 = vmatprep.mubr.f32.mxu0 0.0
  %590 = vmatmul.mubr.f32.gmra.mrb[0].mxu0 %v468
  %v591 = vpop.f32.mrb[0].mxu0
  %v592 = vadd.f32 0.0, %v591
  %v593 = vpop.f32.mrb[0].mxu0
  %594 = vmatprep.mubr.f32.mxu0 0.0
  %595 = vmatmul.mubr.f32.gmra.mrb[0].mxu0 %v471
  %v596 = vpop.f32.mrb[0].mxu0
  %v597 = vadd.f32 0.0, %v596
  %v598 = vpop.f32.mrb[0].mxu0
  %599 = vmatprep.mubr.f32.mxu0 0.0
  %600 = vmatmul.mubr.f32.gmra.mrb[0].mxu0 %v474
  %v601 = vpop.f32.mrb[0].mxu0
  %v602 = vadd.f32 0.0, %v601
  %v603 = vpop.f32.mrb[0].mxu0
  %604 = vmatprep.mubr.f32.mxu0 0.0
  %605 = vmatmul.mubr.f32.gmra.mrb[0].mxu0 %v477
  %v606 = vpop.f32.mrb[0].mxu0
  %v607 = vadd.f32 0.0, %v606
  %v608 = vpop.f32.mrb[0].mxu0
  %609 = vmatprep.mubr.f32.mxu0 0.0
  %610 = vmatmul.mubr.f32.gmra.mrb[0].mxu0 %v480
  %v611 = vpop.f32.mrb[0].mxu0
  %v612 = vadd.f32 0.0, %v611
  %v613 = vpop.f32.mrb[0].mxu0
  %614 = vmatprep.mubr.f32.mxu0 0.0
  %615 = vmatmul.mubr.f32.gmra.mrb[0].mxu0 %v483
  %v616 = vpop.f32.mrb[0].mxu0
  %v617 = vadd.f32 0.0, %v616
  %v618 = vpop.f32.mrb[0].mxu0
  %619 = vmatprep.mubr.f32.mxu0 0.0
  %620 = vmatmul.mubr.f32.gmra.mrb[0].mxu0 %v486
  %v621 = vpop.f32.mrb[0].mxu0
  %v622 = vadd.f32 0.0, %v621
  %v623 = vpop.f32.mrb[0].mxu0
  %624 = vmatprep.mubr.f32.mxu0 0.0
  %625 = vmatmul.mubr.f32.gmra.mrb[0].mxu0 %v489
  %v626 = vpop.f32.mrb[0].mxu0
  %v627 = vadd.f32 0.0, %v626
  %v628 = vpop.f32.mrb[0].mxu0
  %629 = vmatprep.mubr.f32.mxu0 0.0
  %630 = vmatmul.mubr.f32.gmra.mrb[0].mxu0 %v492
  %v631 = vpop.f32.mrb[0].mxu0
  %v632 = vadd.f32 0.0, %v631
  %v633 = vpop.f32.mrb[0].mxu0
  %634 = vmatprep.mubr.f32.mxu0 0.0
  %635 = vmatmul.mubr.f32.gmra.mrb[0].mxu0 %v495
  %v636 = vpop.f32.mrb[0].mxu0
  %v637 = vadd.f32 0.0, %v636
  %v638 = vpop.f32.mrb[0].mxu0
  %639 = vmatprep.mubr.f32.mxu0 0.0
  %640 = vmatmul.mubr.f32.gmra.mrb[0].mxu0 %v498
  %v641 = vpop.f32.mrb[0].mxu0
  %v642 = vadd.f32 0.0, %v641
  %v643 = vpop.f32.mrb[0].mxu0
  %644 = vdwg.mxu0
  %vm645 = vcmask 97280
  %646 = vst.msk [vmem:[%s4] sm:$0xff] %vm645, %v567
  %647 = vst.msk [vmem:[%s4 + $0x8] sm:$0xff] %vm645, %v572
  %648 = vst.msk [vmem:[%s4 + $0x10] sm:$0xff] %vm645, %v577
  %649 = vst.msk [vmem:[%s4 + $0x18] sm:$0xff] %vm645, %v582
  %650 = vst.msk [vmem:[%s4 + $0x20] sm:$0xff] %vm645, %v587
  %651 = vst.msk [vmem:[%s4 + $0x28] sm:$0xff] %vm645, %v592
  %652 = vst.msk [vmem:[%s4 + $0x30] sm:$0xff] %vm645, %v597
  %653 = vst.msk [vmem:[%s4 + $0x38] sm:$0xff] %vm645, %v602
  %654 = vst.msk [vmem:[%s4 + $0x40] sm:$0xff] %vm645, %v607
  %655 = vst.msk [vmem:[%s4 + $0x48] sm:$0xff] %vm645, %v612
  %656 = vst.msk [vmem:[%s4 + $0x50] sm:$0xff] %vm645, %v617
  %657 = vst.msk [vmem:[%s4 + $0x58] sm:$0xff] %vm645, %v622
  %658 = vst.msk [vmem:[%s4 + $0x60] sm:$0xff] %vm645, %v627
  %659 = vst.msk [vmem:[%s4 + $0x68] sm:$0xff] %vm645, %v632
  %660 = vst.msk [vmem:[%s4 + $0x70] sm:$0xff] %vm645, %v637
  %661 = vst.msk [vmem:[%s4 + $0x78] sm:$0xff] %vm645, %v642
  // Predicated region
  $region18: #{tpu_custom_call.1} parent=0 // pred_check
    _
  $region19: #{tpu_custom_call.1} parent=0 // pred_check_branch
    %663 = sbr.rel (0) target = $region21
  $region20: #{tpu_custom_call.1} parent=0 // pred_region
    _
  $region21: #{tpu_custom_call.1} parent=0 // pred_fallthru
    _
  // Predicated region
  $region22: #{tpu_custom_call.1} parent=0 // pred_check
    _
  $region23: #{tpu_custom_call.1} parent=0 // pred_check_branch
    %665 = sbr.rel (0) target = $region25
  $region24: #{tpu_custom_call.1} parent=0 // pred_region
    _
  $region25: #{tpu_custom_call.1} parent=0 // pred_fallthru
    _

</llo_original>
